<compile_context>
chip_gen: v5e
topology: v5e:2x2
jax: 0.10.0
libtpu: 0.0.40
codegen_flags: <defaults>
</compile_context>

<pallas_src>
import functools

import jax
import jax.numpy as jnp
from jax.experimental import pallas as pl
from jax.experimental.pallas import tpu as pltpu


def _mask_kernel(mask_ref, img_ref, out_ref):
    # mask_ref: (bt, 1, ts) bf16 0/1 pixel mask
    # img_ref : (bt, C, ts) image slab, lane axis = flattened (H*W) tile
    # out_ref : (bt, C, ts)
    out_ref[...] = img_ref[...] * mask_ref[...].astype(img_ref.dtype)


def _vmem_budget():
    """Generation-aware (physical VMEM) scoped limit and per-step tile budget."""
    try:
        phys = pltpu.get_tpu_info().vmem_capacity_bytes
    except Exception:
        phys = 64 * 1024 * 1024  # conservative (v7x has the smallest VMEM)
    vmem_limit = min(int(phys * 3 // 4), 96 * 1024 * 1024)
    tile_budget = int(vmem_limit * 3 // 4)  # headroom for compiler scratch
    return vmem_limit, tile_budget


def _choose_tiles(B, C, S, itemsize, tile_budget, target_img_bytes=8 << 20):
    """Pick (batch_tile, spatial_tile) using the real double-buffered footprint."""
    if S % 128 == 0:
        ts_cands = sorted(
            (d for d in range(128, S + 1, 128) if S % d == 0), reverse=True
        )
    else:
        ts_cands = [S]  # full-extent last dim is always a legal block
    c_pad = ((C + 7) // 8) * 8  # sublane padding of the (C, ts) tile in VMEM

    def footprint(bt, ts):
        img_blk = bt * c_pad * ts * itemsize        # one image buffer (padded)
        msk_blk = bt * 8 * ts * 2                   # bf16 mask, 1 -> 8 sublanes
        return 2 * (2 * img_blk + msk_blk)          # double-buffered in + out + mask

    # Largest lane-dense spatial tile that fits with bt = 1.
    ts = next((t for t in ts_cands if footprint(1, t) <= tile_budget), ts_cands[-1])

    # Grow the batch tile (divisors of B) while footprint and target allow.
    bt = 1
    for cand in range(2, B + 1):
        if B % cand:
            continue
        if (footprint(cand, ts) <= tile_budget
                and C * cand * ts * itemsize <= target_img_bytes):
            bt = cand

    # Guarantee >= 2 grid steps so both v7x TensorCores get work.
    if (B // bt) * (S // ts) < 2:
        if bt > 1:
            while bt > 1 and (B // bt) < 2:
                bt -= 1
                while B % bt:
                    bt -= 1
        elif len(ts_cands) > 1:
            ts = ts_cands[1]  # next-largest divisor -> >= 2 spatial steps
    return bt, ts


def image_patch_random_masking(image, key, patch_size, fraction=0.4):
    """image: (B, C, H, W) float array. Returns (masked_image, mask_bool (B,1,H,W))."""
    B, C, H, W = image.shape
    if H % patch_size != 0 or W % patch_size != 0:
        raise ValueError("patch size does not divide image dims")
    N_h, N_w = H // patch_size, W // patch_size
    S = H * W

    # Patch-level random mask; matches torch.rand(...) > fraction semantics.
    # TODO(synk): not bitwise-identical to the torch RNG stream, only distributionally.
    patch_mask = jax.random.uniform(key, (B, 1, N_h, N_w)) > fraction

    # repeat_interleave over H and W on B*Np booleans (tiny, pure XLA). This IS
    # the bool mask output; its bf16 view feeds the kernel (exact for 0/1).
    pixel_mask = jnp.repeat(jnp.repeat(patch_mask, patch_size, axis=2),
                            patch_size, axis=3)                      # (B, 1, H, W) bool
    mask_in = pixel_mask.reshape(B, 1, S).astype(jnp.bfloat16)

    # Flatten (H, W) -> S wrapper-side (free, contiguous) so kernel I/O is lane-dense.
    image_flat = image.reshape(B, C, S)

    vmem_limit, tile_budget = _vmem_budget()
    bt, ts = _choose_tiles(B, C, S, jnp.dtype(image.dtype).itemsize, tile_budget)

    grid_spec = pltpu.PrefetchScalarGridSpec(
        num_scalar_prefetch=0,
        grid=(B // bt, S // ts),
        in_specs=[
            pl.BlockSpec((bt, 1, ts), lambda b, s: (b, 0, s)),
            pl.BlockSpec((bt, C, ts), lambda b, s: (b, 0, s)),
        ],
        out_specs=pl.BlockSpec((bt, C, ts), lambda b, s: (b, 0, s)),
    )

    masked_flat = pl.pallas_call(
        _mask_kernel,
        grid_spec=grid_spec,
        out_shape=jax.ShapeDtypeStruct((B, C, S), image.dtype),
        compiler_params=pltpu.CompilerParams(
            dimension_semantics=("parallel", "parallel"),
            vmem_limit_bytes=vmem_limit,
        ),
    )(mask_in, image_flat)

    masked = masked_flat.reshape(B, C, H, W)
    return masked, pixel_mask


def _reference(image, key, patch_size, fraction=0.4):
    B, C, H, W = image.shape
    N_h, N_w = H // patch_size, W // patch_size
    patch_mask = jax.random.uniform(key, (B, 1, N_h, N_w)) > fraction
    mask = jnp.repeat(jnp.repeat(patch_mask, patch_size, axis=2), patch_size, axis=3)
    return mask.astype(image.dtype) * image, mask


if __name__ == "__main__":
    key = jax.random.PRNGKey(0)
    k_img, k_mask = jax.random.split(key)

    B, C, H, W = 2, 4, 16, 16
    patch_size = 2
    fraction = 0.4

    image = jax.random.normal(k_img, (B, C, H, W), dtype=jnp.float32)

    masked, mask = jax.jit(
        functools.partial(image_patch_random_masking, patch_size=patch_size, fraction=fraction)
    )(image, k_mask)
    masked = jax.block_until_ready(masked)
    mask = jax.block_until_ready(mask)

    ref_masked, ref_mask = _reference(image, k_mask, patch_size, fraction)
    assert masked.shape == (B, C, H, W) and mask.shape == (B, 1, H, W)
    assert mask.dtype == jnp.bool_
    assert jnp.array_equal(mask, ref_mask)
    assert jnp.allclose(masked, ref_masked, atol=0, rtol=0)

    print("KERNEL_OK")
</pallas_src>

<mosaic_0001>
module attributes {stable_mosaic.version = 11 : i64} {
  func.func @_mask_kernel(%arg0: i32, %arg1: i32, %arg2: memref<1x1x256xbf16, #tpu.memory_space<vmem>>, %arg3: memref<1x4x256xf32, #tpu.memory_space<vmem>>, %arg4: memref<1x4x256xf32, #tpu.memory_space<vmem>>) attributes {dimension_semantics = [#tpu.dimension_semantics<parallel>, #tpu.dimension_semantics<parallel>], iteration_bounds = array<i64: 2, 1>, scalar_prefetch = 0 : i64, scratch_operands = 0 : i64, tpu.core_type = #tpu.core_type<tc>, window_params = [{transform_indices = @transform_0, window_bounds = array<i64: 1, 1, 256>}, {transform_indices = @transform_1, window_bounds = array<i64: 1, 4, 256>}, {transform_indices = @transform_2, window_bounds = array<i64: 1, 4, 256>}]} {
    %c0 = arith.constant 0 : index
    %c0_0 = arith.constant 0 : index
    %c0_1 = arith.constant 0 : index
    %0 = vector.load %arg3[%c0, %c0_0, %c0_1] : memref<1x4x256xf32, #tpu.memory_space<vmem>>, vector<1x4x256xf32>
    %c0_2 = arith.constant 0 : index
    %c0_3 = arith.constant 0 : index
    %c0_4 = arith.constant 0 : index
    %1 = vector.load %arg2[%c0_2, %c0_3, %c0_4] : memref<1x1x256xbf16, #tpu.memory_space<vmem>>, vector<1x1x256xbf16>
    %2 = arith.extf %1 : vector<1x1x256xbf16> to vector<1x1x256xf32>
    %3 = vector.broadcast %2 : vector<1x1x256xf32> to vector<1x4x256xf32>
    %4 = arith.mulf %0, %3 : vector<1x4x256xf32>
    %c0_5 = arith.constant 0 : index
    %c0_6 = arith.constant 0 : index
    %c0_7 = arith.constant 0 : index
    %5 = vector.load %arg4[%c0_5, %c0_6, %c0_7] : memref<1x4x256xf32, #tpu.memory_space<vmem>>, vector<1x4x256xf32>
    tpu.vector_store %arg4[%c0_5, %c0_6, %c0_7], %4 {strides = array<i32>} : memref<1x4x256xf32, #tpu.memory_space<vmem>>, vector<1x4x256xf32>,
    return
  }
  func.func @transform_0(%arg0: i32, %arg1: i32) -> (i32, i32, i32) {
    %c0_i32 = arith.constant 0 : i32
    %c0_i32_0 = arith.constant 0 : i32
    return %arg0, %c0_i32, %arg1 : i32, i32, i32
  }
  func.func @transform_1(%arg0: i32, %arg1: i32) -> (i32, i32, i32) {
    %c0_i32 = arith.constant 0 : i32
    %c0_i32_0 = arith.constant 0 : i32
    return %arg0, %c0_i32, %arg1 : i32, i32, i32
  }
  func.func @transform_2(%arg0: i32, %arg1: i32) -> (i32, i32, i32) {
    %c0_i32 = arith.constant 0 : i32
    %c0_i32_0 = arith.constant 0 : i32
    return %arg0, %c0_i32, %arg1 : i32, i32, i32
  }
}

</mosaic_0001>

<llo_original>
// kernel: image_patch_random_masking.1
$region0: #{image_patch_random_masking.1}
  #allocation0 [shape = 'u32[]', space=smem, size = 0x4, offset = 0x4, fixed_abs, tag = 'smem constant byte address 0x4 - core index']
  #allocation1 [shape = 'u32[72,128]{1,0:T(1,128)}', space=vmem, size = 0x9000, scoped, tag = 'internal scratch']
  %s0 = inlined_call_operand.vmem [shape: bf16[2,1,256], index: 0, kind: input, shape index: {}]
  %s1 = inlined_call_operand.vmem [shape: f32[2,4,256], index: 1, kind: input, shape index: {}]
  %s2 = inlined_call_operand.vmem [shape: f32[2,4,256], index: 2, kind: output, shape index: {}]
  %s3 = sld [smem:[#allocation0]]
  $region41: #{image_patch_random_masking.1} parent=0
    _
  %s5 = ssub.s32 1, %s3
  %s6 = scalar_select 0, %s5, %s3
  loop: start=0, step=1, limit=4
  $region2: #{image_patch_random_masking.1} parent=0 // loop_pre_header
    _
  $region3: #{image_patch_random_masking.1} parent=0 // loop_header
    %s8 = sphi 0, %s12
    %p9 = scmp.ge.s32.totalorder %s8, 4
    %s15 = sphi 0, %s27
    %s16 = sphi 0, %s23
    %s17 = sphi 0, %s15
    %s18 = sphi 0, %s16
    %s19 = sphi 0, %s17
    %s20 = sphi 0, %s18
    %s32 = sphi 0, %s34
    %s35 = sphi 0, %s32
    %s36 = sphi 0, %s35
    %s52 = sphi 0, %s36
    %s60 = sphi 0, %s62
    %s63 = sphi 0, %s60
    %s64 = sphi 0, %s63
    %s80 = sphi 0, %s64
    %s88 = sphi 0, %s90
    %s91 = sphi 0, %s88
    %s92 = sphi 0, %s91
    %s108 = sphi 0, %s92
  $region4: #{image_patch_random_masking.1} parent=0 // loop_header_branch
    %11 = sbr.rel (%p9) target = $region8
  $region5: #{image_patch_random_masking.1} parent=0 // loop_body
    %s13 = ssub.s32 %s8, 1
    %s14 = ssub.s32 %s8, 2
    %s21 = sadd.s32 1, %s16
    %p22 = scmp.ge.s32.totalorder %s21, 1
    %s23 = scalar_select %p22, 0, %s21
    %s24 = sadd.s32 1, %s15
    %s25 = scalar_select %p22, %s24, %s15
    %p26 = scmp.ge.s32.totalorder %s25, 2
    %s27 = scalar_select %p26, 0, %s25
    %s28 = ssub.s32 %s15, %s27
    %s29 = ssub.s32 %s16, %s23
    %s30 = sor.u32 %s28, %s29
    %p31 = scmp.eq.s32.totalorder %s30, 0
    %s33 = sadd.s32 %s32, 1
    %s34 = scalar_select %p31, %s32, %s33
    %p37 = pneg %p31
    %p38 = scmp.eq.s32.totalorder %s8, 1
    %p39 = por %p37, %p38
    %p40 = scmp.ne.s32.totalorder %s32, %s35
    %p41 = scmp.eq.s32.totalorder %s8, 0
    %p42 = por %p40, %p41
    %p43 = scmp.ne.s32.totalorder %s32, %s35
    %p44 = scmp.eq.s32.totalorder %s13, 1
    %p45 = por %p43, %p44
    %p46 = scmp.ne.s32.totalorder %s35, %s36
    %p47 = scmp.eq.s32.totalorder %s13, 0
    %p48 = por %p46, %p47
    %p49 = scmp.ne.s32.totalorder %s35, %s36
    %p50 = scmp.eq.s32.totalorder %s14, 1
    %p51 = por %p49, %p50
    %p53 = scmp.ne.s32.totalorder %s36, %s52
    %p54 = scmp.eq.s32.totalorder %s14, 0
    %p55 = por %p53, %p54
    %s56 = ssub.s32 %s15, %s27
    %s57 = ssub.s32 %s16, %s23
    %s58 = sor.u32 %s56, %s57
    %p59 = scmp.eq.s32.totalorder %s58, 0
    %s61 = sadd.s32 %s60, 1
    %s62 = scalar_select %p59, %s60, %s61
    %p65 = pneg %p59
    %p66 = scmp.eq.s32.totalorder %s8, 1
    %p67 = por %p65, %p66
    %p68 = scmp.ne.s32.totalorder %s60, %s63
    %p69 = scmp.eq.s32.totalorder %s8, 0
    %p70 = por %p68, %p69
    %p71 = scmp.ne.s32.totalorder %s60, %s63
    %p72 = scmp.eq.s32.totalorder %s13, 1
    %p73 = por %p71, %p72
    %p74 = scmp.ne.s32.totalorder %s63, %s64
    %p75 = scmp.eq.s32.totalorder %s13, 0
    %p76 = por %p74, %p75
    %p77 = scmp.ne.s32.totalorder %s63, %s64
    %p78 = scmp.eq.s32.totalorder %s14, 1
    %p79 = por %p77, %p78
    %p81 = scmp.ne.s32.totalorder %s64, %s80
    %p82 = scmp.eq.s32.totalorder %s14, 0
    %p83 = por %p81, %p82
    %s84 = ssub.s32 %s15, %s27
    %s85 = ssub.s32 %s16, %s23
    %s86 = sor.u32 %s84, %s85
    %p87 = scmp.eq.s32.totalorder %s86, 0
    %s89 = sadd.s32 %s88, 1
    %s90 = scalar_select %p87, %s88, %s89
    %p93 = pneg %p87
    %p94 = scmp.eq.s32.totalorder %s8, 1
    %p95 = por %p93, %p94
    %p96 = scmp.ne.s32.totalorder %s88, %s91
    %p97 = scmp.eq.s32.totalorder %s8, 0
    %p98 = por %p96, %p97
    %p99 = scmp.ne.s32.totalorder %s88, %s91
    %p100 = scmp.eq.s32.totalorder %s13, 1
    %p101 = por %p99, %p100
    %p102 = scmp.ne.s32.totalorder %s91, %s92
    %p103 = scmp.eq.s32.totalorder %s13, 0
    %p104 = por %p102, %p103
    %p105 = scmp.ne.s32.totalorder %s91, %s92
    %p106 = scmp.eq.s32.totalorder %s14, 1
    %p107 = por %p105, %p106
    %p109 = scmp.ne.s32.totalorder %s92, %s108
    %p110 = scmp.eq.s32.totalorder %s14, 0
    %p111 = por %p109, %p110
    %p112 = scmp.le.s32.totalorder 1, %s8
    %p113 = scmp.lt.s32.totalorder %s8, 3
    %p114 = pnand %p112, %p113
    %p115 = pneg %p114
    // Predicated region
    $region9: #{image_patch_random_masking.1} parent=5 // pred_check
      _
    $region10: #{image_patch_random_masking.1} parent=5 // pred_check_branch
      %117 = sbr.rel (%p114) target = $region12
    $region11: #{image_patch_random_masking.1} parent=5 // pred_region
      %s118 = ssub.s32 %s8, 1
    $region12: #{image_patch_random_masking.1} parent=5 // pred_fallthru
      _
    %p119 = scmp.lt.s32.totalorder %s8, 2
    // Predicated region
    $region13: #{image_patch_random_masking.1} parent=5 // pred_check
      %p120 = pneg %p119
    $region14: #{image_patch_random_masking.1} parent=5 // pred_check_branch
      %122 = sbr.rel (%p120) target = $region16
    $region15: #{image_patch_random_masking.1} parent=5 // pred_region
      // Predicated region
      $region17: #{image_patch_random_masking.1} parent=15 // pred_check
        %p123 = pneg %p42
      $region18: #{image_patch_random_masking.1} parent=15 // pred_check_branch
        %125 = sbr.rel (%p123) target = $region20
      $region19: #{image_patch_random_masking.1} parent=15 // pred_region
        %s126 = smul.u32 2, %s16
        %p127 = scmp.lt.s32.totalorder %s15, 1
        %s128 = scalar_select %p127, %s15, 1
        %p129 = scmp.lt.s32.totalorder %s126, 1
        %s130 = scalar_select %p129, %s126, 1
        %s131 = smul.addr %s128, 2
        %s132 = sadd.s32 %s130, %s131
        %s133 = scalar_lea.vmem %s0, %s132
        %s134 = smul.u32 2, %s16
      $region20: #{image_patch_random_masking.1} parent=15 // pred_fallthru
        _
      // Predicated region
      $region21: #{image_patch_random_masking.1} parent=15 // pred_check
        %p135 = pneg %p70
      $region22: #{image_patch_random_masking.1} parent=15 // pred_check_branch
        %137 = sbr.rel (%p135) target = $region24
      $region23: #{image_patch_random_masking.1} parent=15 // pred_region
        %s138 = smul.u32 2, %s16
        %p139 = scmp.lt.s32.totalorder %s15, 1
        %s140 = scalar_select %p139, %s15, 1
        %p141 = scmp.lt.s32.totalorder %s138, 1
        %s142 = scalar_select %p141, %s138, 1
        %s143 = smul.addr %s140, 2
        %s144 = sadd.s32 %s142, %s143
        %s145 = smul.addr %s144, 4
        %s146 = scalar_lea.vmem %s1, %s145
        %s147 = smul.u32 2, %s16
      $region24: #{image_patch_random_masking.1} parent=15 // pred_fallthru
        _
    $region16: #{image_patch_random_masking.1} parent=5 // pred_fallthru
      _
    %p148 = scmp.le.s32.totalorder 1, %s8
    %p149 = scmp.lt.s32.totalorder %s8, 3
    %p150 = pnand %p148, %p149
    %p151 = pneg %p150
    // Predicated region
    $region25: #{image_patch_random_masking.1} parent=5 // pred_check
      _
    $region26: #{image_patch_random_masking.1} parent=5 // pred_check_branch
      %153 = sbr.rel (%p150) target = $region28
    $region27: #{image_patch_random_masking.1} parent=5 // pred_region
      %s154 = ssub.s32 %s8, 1
      %s155 = smul.u32 2, %s18
      %p156 = scmp.lt.s32.totalorder %s17, 1
      %s157 = scalar_select %p156, %s17, 1
      %p158 = scmp.lt.s32.totalorder %s155, 1
      %s159 = scalar_select %p158, %s155, 1
      %s160 = smul.addr %s157, 2
      %s161 = sadd.s32 %s159, %s160
      %s162 = scalar_lea.vmem %s0, %s161
      %p163 = pneg %p48
      %p164 = pneg %p45
      %s165 = smul.u32 2, %s18
      %p166 = scmp.lt.s32.totalorder %s17, 1
      %s167 = scalar_select %p166, %s17, 1
      %p168 = scmp.lt.s32.totalorder %s165, 1
      %s169 = scalar_select %p168, %s165, 1
      %s170 = smul.addr %s167, 2
      %s171 = sadd.s32 %s169, %s170
      %s172 = smul.addr %s171, 4
      %s173 = scalar_lea.vmem %s1, %s172
      %p174 = pneg %p76
      %p175 = pneg %p73
      %p176 = pneg %p104
      %p177 = pneg %p101
      %s178 = smul.u32 2, %s18
      %p179 = scmp.lt.s32.totalorder %s17, 1
      %s180 = scalar_select %p179, %s17, 1
      %p181 = scmp.lt.s32.totalorder %s178, 1
      %s182 = scalar_select %p181, %s178, 1
      %s183 = smul.addr %s180, 2
      %s184 = sadd.s32 %s182, %s183
      %s185 = smul.addr %s184, 4
      %s186 = scalar_lea.vmem %s2, %s185
      %s187 = smul.u32 2, %s18
      %p188 = scmp.lt.s32.totalorder %s17, 1
      %s189 = scalar_select %p188, %s17, 1
      %p190 = scmp.lt.s32.totalorder %s187, 1
      %s191 = scalar_select %p190, %s187, 1
      %s192 = smul.addr %s189, 2
      %s193 = sadd.s32 %s191, %s192
      %s194 = scalar_lea.vmem %s0, %s193
      %s195 = smul.u32 2, %s18
      %s196 = smul.u32 2, %s18
      %p197 = scmp.lt.s32.totalorder %s17, 1
      %s198 = scalar_select %p197, %s17, 1
      %p199 = scmp.lt.s32.totalorder %s196, 1
      %s200 = scalar_select %p199, %s196, 1
      %s201 = smul.addr %s198, 2
      %s202 = sadd.s32 %s200, %s201
      %s203 = smul.addr %s202, 4
      %s204 = scalar_lea.vmem %s1, %s203
      %s205 = smul.u32 2, %s18
      %s206 = smul.u32 2, %s18
      %p207 = scmp.lt.s32.totalorder %s17, 1
      %s208 = scalar_select %p207, %s17, 1
      %p209 = scmp.lt.s32.totalorder %s206, 1
      %s210 = scalar_select %p209, %s206, 1
      %s211 = smul.addr %s208, 2
      %s212 = sadd.s32 %s210, %s211
      %s213 = smul.addr %s212, 4
      %s214 = scalar_lea.vmem %s2, %s213
      %s215 = smul.u32 2, %s18
      %v216 = vld [vmem:[%s204] sm:$0xff]
      %v217 = vld [vmem:[%s194] sm:$0x3]
      %v218 = vunpack.c.l.bf16 %v217
      %v220 = vperm.slane %v218, 0
      %v221 = vperm.slane %v218, 2
      %v224 = vperm.slane %v220, 0
      %v225 = vperm.slane %v221, 0
      %v228 = vrot.slane %v225, 4
      %vm229 = vcmask 1043456
      %v230 = vsel %vm229, %v224, %v228
      %v232 = vmul.f32 %v216, %v230
      %233 = vst [vmem:[%s214] sm:$0xff] %v232
      %s234 = smul.u32 2, %s18
      %p235 = scmp.lt.s32.totalorder %s17, 1
      %s236 = scalar_select %p235, %s17, 1
      %p237 = scmp.lt.s32.totalorder %s234, 1
      %s238 = scalar_select %p237, %s234, 1
      %s239 = smul.addr %s236, 2
      %s240 = sadd.s32 %s238, %s239
      %s241 = smul.addr %s240, 4
      %s242 = scalar_lea.vmem %s2, %s241
      // Predicated region
      $region29: #{image_patch_random_masking.1} parent=27 // pred_check
        %p243 = pneg %p101
      $region30: #{image_patch_random_masking.1} parent=27 // pred_check_branch
        %245 = sbr.rel (%p243) target = $region32
      $region31: #{image_patch_random_masking.1} parent=27 // pred_region
        %s246 = smul.u32 2, %s18
      $region32: #{image_patch_random_masking.1} parent=27 // pred_fallthru
        _
    $region28: #{image_patch_random_masking.1} parent=5 // pred_fallthru
      _
    %p247 = scmp.le.s32.totalorder 2, %s8
    // Predicated region
    $region33: #{image_patch_random_masking.1} parent=5 // pred_check
      %p248 = pneg %p247
    $region34: #{image_patch_random_masking.1} parent=5 // pred_check_branch
      %250 = sbr.rel (%p248) target = $region36
    $region35: #{image_patch_random_masking.1} parent=5 // pred_region
      %s251 = ssub.s32 %s8, 2
      // Predicated region
      $region37: #{image_patch_random_masking.1} parent=35 // pred_check
        %p252 = pneg %p107
      $region38: #{image_patch_random_masking.1} parent=35 // pred_check_branch
        %254 = sbr.rel (%p252) target = $region40
      $region39: #{image_patch_random_masking.1} parent=35 // pred_region
        %s255 = smul.u32 2, %s20
        %p256 = scmp.lt.s32.totalorder %s19, 1
        %s257 = scalar_select %p256, %s19, 1
        %p258 = scmp.lt.s32.totalorder %s255, 1
        %s259 = scalar_select %p258, %s255, 1
        %s260 = smul.addr %s257, 2
        %s261 = sadd.s32 %s259, %s260
        %s262 = smul.addr %s261, 4
        %s263 = scalar_lea.vmem %s2, %s262
      $region40: #{image_patch_random_masking.1} parent=35 // pred_fallthru
        _
    $region36: #{image_patch_random_masking.1} parent=5 // pred_fallthru
      _
  $region6: #{image_patch_random_masking.1} parent=0 // loop_footer
    %s12 = sadd.s32 1, %s8
  $region7: #{image_patch_random_masking.1} parent=0 // loop_footer_branch
    %7 = sbr.rel target = $region3
  $region8: #{image_patch_random_masking.1} parent=0 // loop_exit
    _

</llo_original>
